<compile_context>
chip_gen: v5e
topology: v5e:2x2
jax: 0.10.0
libtpu: 0.0.40
codegen_flags: <defaults>
</compile_context>

<pallas_src>
import functools
import jax
import jax.numpy as jnp
import numpy as np
from jax import lax
from jax.experimental import pallas as pl
from jax.experimental.pallas import tpu as pltpu


# ---------------------------------------------------------------------------
# Fused kernel: first LSTM step (from zero state) + hidden2tag linear
#               + log_softmax over the BATCH axis (torch dim=1).
# ---------------------------------------------------------------------------
def fused_lstm_tag_kernel(x0_ref, wih_ref, b_ref, wtag_ref, btag_ref, out_ref):
    # gates = x0 @ W_ih^T + (b_ih + b_hh)   ;  h0 @ W_hh^T == 0 so it is omitted.
    gates = (jnp.dot(x0_ref[...], wih_ref[...],
                     preferred_element_type=jnp.float32)
             + b_ref[...])                                   # [B, 4H]

    H = wtag_ref.shape[0]
    i_g = jax.nn.sigmoid(gates[:, 0 * H:1 * H])
    # forget gate would multiply c0 == 0 -> contributes nothing; skipped.
    g_g = jnp.tanh(gates[:, 2 * H:3 * H])
    o_g = jax.nn.sigmoid(gates[:, 3 * H:4 * H])

    c1 = i_g * g_g                                           # c1 = f*0 + i*g
    h1 = o_g * jnp.tanh(c1)                                  # [B, H] == lstm_out[0]

    # hidden2tag + numerically-stable log_softmax over the batch axis.
    logits = (jnp.dot(h1, wtag_ref[...],
                      preferred_element_type=jnp.float32)
              + btag_ref[...])                               # [B, T]
    m = jnp.max(logits, axis=0, keepdims=True)
    z = logits - m
    lse = jnp.log(jnp.sum(jnp.exp(z), axis=0, keepdims=True))
    out_ref[...] = z - lse


# ---------------------------------------------------------------------------
# Wrapper: embedding gather for x[0] only (plain JAX glue), weight transposes,
# single pallas_call.
# ---------------------------------------------------------------------------
@jax.jit
def my_lstm_forward(x_idx, embed_w, w_ih, w_hh, b_ih, b_hh, w_tag, b_tag):
    # Only the first time step is observable in the module's output.
    x0_embed = jnp.take(embed_w, x_idx[0], axis=0)           # [B, E]
    B, E = x0_embed.shape
    H = w_hh.shape[1]
    T = w_tag.shape[0]

    wih_t = w_ih.T                                           # [E, 4H]
    bias = (b_ih + b_hh)[None, :]                            # [1, 4H]
    wtag_t = w_tag.T                                         # [H, T]
    btag = b_tag[None, :]                                    # [1, T]

    return pl.pallas_call(
        fused_lstm_tag_kernel,
        out_shape=jax.ShapeDtypeStruct((B, T), jnp.float32),
        grid_spec=pltpu.PrefetchScalarGridSpec(
            num_scalar_prefetch=0,
            grid=(1,),
            in_specs=[
                pl.BlockSpec((B, E), lambda i: (0, 0)),
                pl.BlockSpec((E, 4 * H), lambda i: (0, 0)),
                pl.BlockSpec((1, 4 * H), lambda i: (0, 0)),
                pl.BlockSpec((H, T), lambda i: (0, 0)),
                pl.BlockSpec((1, T), lambda i: (0, 0)),
            ],
            out_specs=pl.BlockSpec((B, T), lambda i: (0, 0)),
        ),
        compiler_params=pltpu.CompilerParams(
            dimension_semantics=("arbitrary",)),
    )(x0_embed, wih_t, bias, wtag_t, btag)


# ---------------------------------------------------------------------------
# Pure-JAX reference mirroring the FULL torch semantics (entire sequence scan,
# hidden2tag on all steps, log_softmax over dim=1, then take [0]).
# ---------------------------------------------------------------------------
def ref_forward(x_idx, embed_w, w_ih, w_hh, b_ih, b_hh, w_tag, b_tag):
    embeds = jnp.take(embed_w, x_idx, axis=0)                # [S, B, E]
    B = embeds.shape[1]
    H = w_hh.shape[1]

    def step(carry, x_t):
        h, c = carry
        gates = x_t @ w_ih.T + b_ih + h @ w_hh.T + b_hh
        i_g, f_g, g_g, o_g = jnp.split(gates, 4, axis=-1)
        i_g = jax.nn.sigmoid(i_g)
        f_g = jax.nn.sigmoid(f_g)
        g_g = jnp.tanh(g_g)
        o_g = jax.nn.sigmoid(o_g)
        c = f_g * c + i_g * g_g
        h = o_g * jnp.tanh(c)
        return (h, c), h

    h0 = jnp.zeros((B, H), jnp.float32)
    c0 = jnp.zeros((B, H), jnp.float32)
    _, lstm_out = lax.scan(step, (h0, c0), embeds)           # [S, B, H]

    tag_space = lstm_out @ w_tag.T + b_tag                   # [S, B, T]
    tag_scores = jax.nn.log_softmax(tag_space, axis=1)       # dim=1 == batch axis
    return tag_scores[0]


if __name__ == "__main__":
    # Small, deterministic configuration consistent with the module's forward.
    VOCAB, TAG = 50, 8
    EMBED_DIM, HIDDEN_DIM, BATCH_SIZE, SEQ_LEN = 32, 32, 8, 4   # 4H = 128 lanes

    key = jax.random.PRNGKey(0)
    ks = jax.random.split(key, 8)
    s = 1.0 / np.sqrt(HIDDEN_DIM)

    embed_w = jax.random.normal(ks[0], (VOCAB, EMBED_DIM), jnp.float32)
    w_ih = jax.random.uniform(ks[1], (4 * HIDDEN_DIM, EMBED_DIM), jnp.float32, -s, s)
    w_hh = jax.random.uniform(ks[2], (4 * HIDDEN_DIM, HIDDEN_DIM), jnp.float32, -s, s)
    b_ih = jax.random.uniform(ks[3], (4 * HIDDEN_DIM,), jnp.float32, -s, s)
    b_hh = jax.random.uniform(ks[4], (4 * HIDDEN_DIM,), jnp.float32, -s, s)
    w_tag = jax.random.uniform(ks[5], (TAG, HIDDEN_DIM), jnp.float32, -s, s)
    b_tag = jax.random.uniform(ks[6], (TAG,), jnp.float32, -s, s)

    x = jax.random.randint(ks[7], (SEQ_LEN, BATCH_SIZE), 0, VOCAB, jnp.int32)

    out = my_lstm_forward(x, embed_w, w_ih, w_hh, b_ih, b_hh, w_tag, b_tag)
    out = jax.block_until_ready(out)

    ref = ref_forward(x, embed_w, w_ih, w_hh, b_ih, b_hh, w_tag, b_tag)
    np.testing.assert_allclose(np.asarray(out), np.asarray(ref),
                               rtol=1e-5, atol=1e-5)
    assert out.shape == (BATCH_SIZE, TAG)
    print("KERNEL_OK")
</pallas_src>

<mosaic_0001>
module attributes {stable_mosaic.version = 11 : i64} {
  func.func @fused_lstm_tag_kernel(%arg0: i32, %arg1: memref<8x32xf32, #tpu.memory_space<vmem>>, %arg2: memref<32x128xf32, #tpu.memory_space<vmem>>, %arg3: memref<1x128xf32, #tpu.memory_space<vmem>>, %arg4: memref<32x8xf32, #tpu.memory_space<vmem>>, %arg5: memref<1x8xf32, #tpu.memory_space<vmem>>, %arg6: memref<8x8xf32, #tpu.memory_space<vmem>>) attributes {dimension_semantics = [#tpu.dimension_semantics<arbitrary>], iteration_bounds = array<i64: 1>, scalar_prefetch = 0 : i64, scratch_operands = 0 : i64, tpu.core_type = #tpu.core_type<tc>, window_params = [{pipeline_mode = #tpu.pipeline_mode<synchronous>, transform_indices = @transform_0, window_bounds = array<i64: 8, 32>}, {pipeline_mode = #tpu.pipeline_mode<synchronous>, transform_indices = @transform_1, window_bounds = array<i64: 32, 128>}, {pipeline_mode = #tpu.pipeline_mode<synchronous>, transform_indices = @transform_2, window_bounds = array<i64: 1, 128>}, {pipeline_mode = #tpu.pipeline_mode<synchronous>, transform_indices = @transform_3, window_bounds = array<i64: 32, 8>}, {pipeline_mode = #tpu.pipeline_mode<synchronous>, transform_indices = @transform_4, window_bounds = array<i64: 1, 8>}, {pipeline_mode = #tpu.pipeline_mode<synchronous>, transform_indices = @transform_5, window_bounds = array<i64: 8, 8>}]} {
    %c0 = arith.constant 0 : index
    %c0_0 = arith.constant 0 : index
    %0 = vector.load %arg1[%c0, %c0_0] : memref<8x32xf32, #tpu.memory_space<vmem>>, vector<8x32xf32>
    %c0_1 = arith.constant 0 : index
    %c0_2 = arith.constant 0 : index
    %1 = vector.load %arg2[%c0_1, %c0_2] : memref<32x128xf32, #tpu.memory_space<vmem>>, vector<32x128xf32>
    %cst = arith.constant dense<0.000000e+00> : vector<8x128xf32>
    %2 = tpu.matmul %0, %1, %cst {dimension_numbers = #tpu.dot_dimension_numbers<[1], [0], [0], [1], [0, 0, 1, 1], [], []>} : vector<8x32xf32>, vector<32x128xf32>, vector<8x128xf32> -> vector<8x128xf32>
    %c0_3 = arith.constant 0 : index
    %c0_4 = arith.constant 0 : index
    %3 = vector.load %arg3[%c0_3, %c0_4] : memref<1x128xf32, #tpu.memory_space<vmem>>, vector<1x128xf32>
    %4 = vector.broadcast %3 : vector<1x128xf32> to vector<8x128xf32>
    %5 = arith.addf %2, %4 : vector<8x128xf32>
    %6 = vector.extract_strided_slice %5 {offsets = [0, 0], sizes = [8, 32], strides = [1, 1]} : vector<8x128xf32> to vector<8x32xf32>
    %7 = arith.negf %6 : vector<8x32xf32>
    %8 = math.exp %7 : vector<8x32xf32>
    %cst_5 = arith.constant 1.000000e+00 : f32
    %9 = vector.broadcast %cst_5 : f32 to vector<8x32xf32>
    %10 = arith.addf %9, %8 : vector<8x32xf32>
    %11 = arith.divf %9, %10 : vector<8x32xf32>
    %12 = vector.extract_strided_slice %5 {offsets = [0, 64], sizes = [8, 32], strides = [1, 1]} : vector<8x128xf32> to vector<8x32xf32>
    %13 = math.tanh %12 : vector<8x32xf32>
    %14 = vector.extract_strided_slice %5 {offsets = [0, 96], sizes = [8, 32], strides = [1, 1]} : vector<8x128xf32> to vector<8x32xf32>
    %15 = arith.negf %14 : vector<8x32xf32>
    %16 = math.exp %15 : vector<8x32xf32>
    %cst_6 = arith.constant 1.000000e+00 : f32
    %17 = vector.broadcast %cst_6 : f32 to vector<8x32xf32>
    %18 = arith.addf %17, %16 : vector<8x32xf32>
    %19 = arith.divf %17, %18 : vector<8x32xf32>
    %20 = arith.mulf %11, %13 : vector<8x32xf32>
    %21 = math.tanh %20 : vector<8x32xf32>
    %22 = arith.mulf %19, %21 : vector<8x32xf32>
    %c0_7 = arith.constant 0 : index
    %c0_8 = arith.constant 0 : index
    %23 = vector.load %arg4[%c0_7, %c0_8] : memref<32x8xf32, #tpu.memory_space<vmem>>, vector<32x8xf32>
    %cst_9 = arith.constant dense<0.000000e+00> : vector<8x8xf32>
    %24 = tpu.matmul %22, %23, %cst_9 {dimension_numbers = #tpu.dot_dimension_numbers<[1], [0], [0], [1], [0, 0, 1, 1], [], []>} : vector<8x32xf32>, vector<32x8xf32>, vector<8x8xf32> -> vector<8x8xf32>
    %c0_10 = arith.constant 0 : index
    %c0_11 = arith.constant 0 : index
    %25 = vector.load %arg5[%c0_10, %c0_11] : memref<1x8xf32, #tpu.memory_space<vmem>>, vector<1x8xf32>
    %26 = vector.broadcast %25 : vector<1x8xf32> to vector<8x8xf32>
    %27 = arith.addf %24, %26 : vector<8x8xf32>
    %cst_12 = arith.constant dense<0xFF800000> : vector<8xf32>
    %28 = vector.multi_reduction <maximumf>, %27, %cst_12 [0] : vector<8x8xf32> to vector<8xf32>
    %29 = vector.shape_cast %28 : vector<8xf32> to vector<1x8xf32>
    %30 = vector.broadcast %29 : vector<1x8xf32> to vector<8x8xf32>
    %31 = arith.subf %27, %30 : vector<8x8xf32>
    %32 = math.exp %31 : vector<8x8xf32>
    %cst_13 = arith.constant dense<0.000000e+00> : vector<8xf32>
    %33 = vector.multi_reduction <add>, %32, %cst_13 [0] : vector<8x8xf32> to vector<8xf32>
    %34 = vector.shape_cast %33 : vector<8xf32> to vector<1x8xf32>
    %35 = math.log %34 : vector<1x8xf32>
    %36 = vector.broadcast %35 : vector<1x8xf32> to vector<8x8xf32>
    %37 = arith.subf %31, %36 : vector<8x8xf32>
    %c0_14 = arith.constant 0 : index
    %c0_15 = arith.constant 0 : index
    %38 = vector.load %arg6[%c0_14, %c0_15] : memref<8x8xf32, #tpu.memory_space<vmem>>, vector<8x8xf32>
    tpu.vector_store %arg6[%c0_14, %c0_15], %37 {strides = array<i32>} : memref<8x8xf32, #tpu.memory_space<vmem>>, vector<8x8xf32>,
    return
  }
  func.func @transform_0(%arg0: i32) -> (i32, i32) {
    %c0_i32 = arith.constant 0 : i32
    %c0_i32_0 = arith.constant 0 : i32
    %c0_i32_1 = arith.constant 0 : i32
    return %c0_i32, %c0_i32_0 : i32, i32
  }
  func.func @transform_1(%arg0: i32) -> (i32, i32) {
    %c0_i32 = arith.constant 0 : i32
    %c0_i32_0 = arith.constant 0 : i32
    %c0_i32_1 = arith.constant 0 : i32
    return %c0_i32, %c0_i32_0 : i32, i32
  }
  func.func @transform_2(%arg0: i32) -> (i32, i32) {
    %c0_i32 = arith.constant 0 : i32
    %c0_i32_0 = arith.constant 0 : i32
    %c0_i32_1 = arith.constant 0 : i32
    return %c0_i32, %c0_i32_0 : i32, i32
  }
  func.func @transform_3(%arg0: i32) -> (i32, i32) {
    %c0_i32 = arith.constant 0 : i32
    %c0_i32_0 = arith.constant 0 : i32
    %c0_i32_1 = arith.constant 0 : i32
    return %c0_i32, %c0_i32_0 : i32, i32
  }
  func.func @transform_4(%arg0: i32) -> (i32, i32) {
    %c0_i32 = arith.constant 0 : i32
    %c0_i32_0 = arith.constant 0 : i32
    %c0_i32_1 = arith.constant 0 : i32
    return %c0_i32, %c0_i32_0 : i32, i32
  }
  func.func @transform_5(%arg0: i32) -> (i32, i32) {
    %c0_i32 = arith.constant 0 : i32
    %c0_i32_0 = arith.constant 0 : i32
    %c0_i32_1 = arith.constant 0 : i32
    return %c0_i32, %c0_i32_0 : i32, i32
  }
}

</mosaic_0001>

<llo_original>
// kernel: my_lstm_forward.1
$region0: #{my_lstm_forward.1}
  #allocation0 [shape = 'u32[]', space=smem, size = 0x4, offset = 0x4, fixed_abs, tag = 'smem constant byte address 0x4 - core index']
  #allocation1 [shape = 'u32[72,128]{1,0:T(1,128)}', space=vmem, size = 0x9000, scoped, tag = 'internal scratch']
  %s0 = inlined_call_operand.vmem [shape: f32[8,32], index: 0, kind: input, shape index: {}]
  %s1 = inlined_call_operand.vmem [shape: f32[32,128], index: 1, kind: input, shape index: {}]
  %s2 = inlined_call_operand.vmem [shape: f32[1,128], index: 2, kind: input, shape index: {}]
  %s3 = inlined_call_operand.vmem [shape: f32[32,8], index: 3, kind: input, shape index: {}]
  %s4 = inlined_call_operand.vmem [shape: f32[1,8], index: 4, kind: input, shape index: {}]
  %s5 = inlined_call_operand.hbm [shape: f32[8,8], index: 5, kind: output, shape index: {}]
  %s6 = sld [smem:[#allocation0]]
  $region30: #{my_lstm_forward.1} parent=0
    _
  %s8 = ssub.s32 1, %s6
  %s9 = scalar_select 0, %s8, %s6
  $region1: #{my_lstm_forward.1} parent=0
    #allocation2 [shape = 'u8[4096]{0}', space=vmem, size = 0x1000, scoped, tag = 'output window, operand 0, single buffered']
    #allocation3 [shape = 's32[1]{0}', space=sflag, size = 0x4, scoped, tag = 'scoped memory for my_lstm_forward.1']
    %10 = vsyncpa [#allocation3], 0
    // Predicated region
    $region2: #{my_lstm_forward.1} parent=1 // pred_check
      _
    $region3: #{my_lstm_forward.1} parent=1 // pred_check_branch
      %12 = sbr.rel (0) target = $region5
    $region4: #{my_lstm_forward.1} parent=1 // pred_region
      _
    $region5: #{my_lstm_forward.1} parent=1 // pred_fallthru
      _
    // Predicated region
    $region6: #{my_lstm_forward.1} parent=1 // pred_check
      _
    $region7: #{my_lstm_forward.1} parent=1 // pred_check_branch
      %14 = sbr.rel (0) target = $region9
    $region8: #{my_lstm_forward.1} parent=1 // pred_region
      _
    $region9: #{my_lstm_forward.1} parent=1 // pred_fallthru
      _
    // Predicated region
    $region10: #{my_lstm_forward.1} parent=1 // pred_check
      _
    $region11: #{my_lstm_forward.1} parent=1 // pred_check_branch
      %16 = sbr.rel (0) target = $region13
    $region12: #{my_lstm_forward.1} parent=1 // pred_region
      _
    $region13: #{my_lstm_forward.1} parent=1 // pred_fallthru
      _
    // Predicated region
    $region14: #{my_lstm_forward.1} parent=1 // pred_check
      _
    $region15: #{my_lstm_forward.1} parent=1 // pred_check_branch
      %18 = sbr.rel (0) target = $region17
    $region16: #{my_lstm_forward.1} parent=1 // pred_region
      _
    $region17: #{my_lstm_forward.1} parent=1 // pred_fallthru
      _
    // Predicated region
    $region18: #{my_lstm_forward.1} parent=1 // pred_check
      _
    $region19: #{my_lstm_forward.1} parent=1 // pred_check_branch
      %20 = sbr.rel (0) target = $region21
    $region20: #{my_lstm_forward.1} parent=1 // pred_region
      _
    $region21: #{my_lstm_forward.1} parent=1 // pred_fallthru
      _
    %v21 = vld [vmem:[%s0] sm:$0xff]
    %v22 = vld [vmem:[%s1] sm:$0xff]
    %v23 = vld [vmem:[%s1 + $0x8] sm:$0xff]
    %v24 = vld [vmem:[%s1 + $0x10] sm:$0xff]
    %v25 = vld [vmem:[%s1 + $0x18] sm:$0xff]
    %v26 = vld [vmem:[%s2] sm:$0x1]
    %v28 = vperm.slane %v26, 0
    %vm30 = vcmask 261120
    %v32 = vsel %vm30, %v21, 0
    %34 = vmatpush.msra.mxu0 0.0
    %35 = vmatpush.msra.mxu0 0.0
    %36 = vmatpush.msra.mxu0 0.0
    %37 = vmatpush.msra.mxu0 0.0
    %38 = vmatpush.msra.mxu0 0.0
    %39 = vmatpush.msra.mxu0 0.0
    %40 = vmatpush.msra.mxu0 0.0
    %41 = vmatpush.msra.mxu0 0.0
    %42 = vmatpush.msra.mxu0 0.0
    %43 = vmatpush.msra.mxu0 0.0
    %44 = vmatpush.msra.mxu0 0.0
    %45 = vmatpush.msra.mxu0 0.0
    %46 = vmatpush.msra.mxu0 %v25
    %47 = vmatpush.msra.mxu0 %v24
    %48 = vmatpush.msra.mxu0 %v23
    %49 = vmatpush.msra.mxu0 %v22
    %50 = vmatmul.f32.gmra.mxu0 %v32
    %v51 = vpop.f32.mrf.mxu0
    %v52 = vadd.f32 %v28, %v51
    %53 = vdwg.mxu0
    %v54 = vxor.u32 %v52, 2147483648
    %v55 = vmul.f32 %v54, 1.442695
    %v56 = vpow.pop %v55
    %v57 = vadd.f32 %v56, 1.0
    %v58 = vrcp.pop %v57
    %v59 = vmul.f32 %v57, %v58
    %v60 = vsub.f32 1.0, %v59
    %v61 = vmul.f32 %v58, %v60
    %v62 = vadd.f32 %v58, %v61
    %vm63 = vweird.f32 %v57
    %vm64 = vweird.f32 %v58
    %vm65 = vmor %vm63, %vm64
    %v66 = vsel %vm65, %v58, %v62
    %v67 = vand.u32 2147483647, %v57
    %vm68 = vcmp.eq.f32.partialorder %v67, 8.507059e+37
    %v69 = vand.u32 %v57, 2147483648
    %v70 = vor.u32 1.1754944e-38, %v69
    %v71 = vsel %vm68, %v70, %v66
    %v72 = vmul.f32 1.0, %v71
    %v73 = vtanh.pop %v52
    %75 = vrot.lane.b32.xlu0 %v73, 64
    %v76 = vpop.permute.xlu0 %75
    %v78 = vmul.f32 %v72, %v76
    %v79 = vtanh.pop %v78
    %81 = vrot.lane.b32.xlu0 %v79, 96
    %v82 = vpop.permute.xlu0 %81
    %v84 = vmul.f32 %v72, %v82
    %v85 = vld [vmem:[%s3] sm:$0xff]
    %v86 = vld [vmem:[%s3 + $0x8] sm:$0xff]
    %v87 = vld [vmem:[%s3 + $0x10] sm:$0xff]
    %v88 = vld [vmem:[%s3 + $0x18] sm:$0xff]
    %v89 = vld [vmem:[%s4] sm:$0x1]
    %v91 = vperm.slane %v89, 0
    %94 = vrot.lane.b32.xlu0 %v84, 32
    %v95 = vpop.permute.xlu0 %94
    %v96 = vsel %vm30, %v95, 0
    %98 = vmatpush.msra.mxu0 0.0
    %99 = vmatpush.msra.mxu0 0.0
    %100 = vmatpush.msra.mxu0 0.0
    %101 = vmatpush.msra.mxu0 0.0
    %102 = vmatpush.msra.mxu0 0.0
    %103 = vmatpush.msra.mxu0 0.0
    %104 = vmatpush.msra.mxu0 0.0
    %105 = vmatpush.msra.mxu0 0.0
    %106 = vmatpush.msra.mxu0 0.0
    %107 = vmatpush.msra.mxu0 0.0
    %108 = vmatpush.msra.mxu0 0.0
    %109 = vmatpush.msra.mxu0 0.0
    %110 = vmatpush.msra.mxu0 %v88
    %111 = vmatpush.msra.mxu0 %v87
    %112 = vmatpush.msra.mxu0 %v86
    %113 = vmatpush.msra.mxu0 %v85
    %114 = vmatmul.f32.gmra.mxu0 %v96
    %v115 = vpop.f32.mrf.mxu0
    %v116 = vadd.f32 %v91, %v115
    %117 = vdwg.mxu0
    %vm118 = vcmask 64512
    %v119 = vsel %vm118, %v116, -inf
    %v120 = vrot.slane %v119, 4
    %v121 = vmax.f32 %v119, %v120
    %v122 = vrot.slane %v121, 2
    %v123 = vmax.f32 %v121, %v122
    %v124 = vrot.slane %v123, 1
    %v125 = vmax.f32 %v123, %v124
    %v126 = vsub.f32 %v116, %v125
    %v127 = vmul.f32 %v126, 1.442695
    %v128 = vpow.pop %v127
    %v129 = vsel %vm118, %v128, 0.0
    %v130 = vrot.slane %v129, 4
    %v131 = vadd.f32 %v129, %v130
    %v132 = vrot.slane %v131, 2
    %v133 = vadd.f32 %v131, %v132
    %v134 = vrot.slane %v133, 1
    %v135 = vadd.f32 %v133, %v134
    %v136 = vlog2.pop %v135
    %v137 = vmul.f32 %v136, 0.6931472
    %v138 = vsub.f32 %v126, %v137
    %139 = vst.msk [vmem:[#allocation2] sm:$0xff] %vm118, %v138
    // Predicated region
    $region22: #{my_lstm_forward.1} parent=1 // pred_check
      _
    $region23: #{my_lstm_forward.1} parent=1 // pred_check_branch
      %141 = sbr.rel (0) target = $region25
    $region24: #{my_lstm_forward.1} parent=1 // pred_region
      %143 = vsyncadd [#allocation3], 0
      %s145 = sshll.u32 [#allocation2], 4
      %s146 = int_to_ptr.vmem [resolvable:$true] %s145
      %s147 = sshll.u32 %s5, 4
      %s148 = int_to_ptr.hbm [resolvable:$true] %s147
      %150 = dma.vmem_to_hbm [thread:$0]  %s146, 128, %s148, [#allocation3]
    $region25: #{my_lstm_forward.1} parent=1 // pred_fallthru
      _
    // Predicated region
    $region26: #{my_lstm_forward.1} parent=1 // pred_check
      _
    $region27: #{my_lstm_forward.1} parent=1 // pred_check_branch
      %152 = sbr.rel (0) target = $region29
    $region28: #{my_lstm_forward.1} parent=1 // pred_region
      %154 = dma.done [#allocation3], 128
    $region29: #{my_lstm_forward.1} parent=1 // pred_fallthru
      _
    %155 = vsyncpa [#allocation3], 1

</llo_original>
